<compile_context>
chip_gen: v6e
topology: v6e:2x2x1
jax: 0.10.0
libtpu: 0.0.40
codegen_flags: <defaults>
</compile_context>

<pallas_src>
import functools
import math

import jax
import jax.numpy as jnp
from jax import lax
from jax.experimental import pallas as pl
from jax.experimental.pallas import tpu as pltpu


_SQRT3 = math.sqrt(3.0)


def _round_up(v, m):
    return ((v + m - 1) // m) * m


def _cdiv(a, b):
    return -(-a // b)


def _edge_sh_kernel(vec_ref, emb_ref, sh_ref, *, num_basis, step, lmax,
                    sh_scales, approx_reciprocal, zero_pad_rows):
    """Per-edge radial embedding + real spherical harmonics.

    Layout (edges on lanes):
      vec_ref: (3, TE)      rows 0..2 = x, y, z of edge_vec
      emb_ref: (B_pad, TE)  rows 0..B-1 = smooth_finite basis * sqrt(B)
      sh_ref:  (S_pad, TE)  rows 0..(lmax+1)^2-1 = SH components ('norm' base)
    """
    v = vec_ref[...].astype(jnp.float32)
    x = v[0:1, :]
    y = v[1:2, :]
    z = v[2:3, :]

    r2 = x * x + y * y + z * z                              # (1, TE)

    # ---- edge length via rsqrt (1 EUP op) + VALU multiply ------------------
    r2_pos = r2 > 0.0
    r_inv = jnp.where(r2_pos, lax.rsqrt(jnp.where(r2_pos, r2, 1.0)), 0.0)
    r = r2 * r_inv                                          # |edge_vec|

    # ---- soft_one_hot_linspace(basis='smooth_finite', cutoff=True) --------
    # sus(d+1)*sus(1-d) == exp(-2/(1-d^2)) for |d| < 1, else 0.
    b_pad, te = emb_ref.shape
    b_idx = lax.broadcasted_iota(jnp.int32, (b_pad, te), 0)
    centers = (b_idx.astype(jnp.float32) + 1.0) * step      # linspace(0,end,B+2)[1:-1]
    diff = (r - centers) * (1.0 / step)                     # (B_pad, TE)
    den = 1.0 - diff * diff
    valid = jnp.logical_and(den > 0.0, b_idx < num_basis)   # also zeroes pad rows
    safe_den = jnp.where(valid, den, 1.0)                   # guard before reciprocal
    if approx_reciprocal:
        inv_den = pl.reciprocal(safe_den, approx=True)
    else:
        inv_den = 1.0 / safe_den
    const = 1.14136 * math.exp(2.0) * math.sqrt(float(num_basis))
    emb = jnp.where(valid, const * jnp.exp(-2.0 * inv_den), 0.0)
    emb_ref[...] = emb.astype(emb_ref.dtype)

    # ---- spherical harmonics of normalized edge vector (e3nn order) -------
    # normalize=True; zero-length edges map to the zero vector.
    ux = x * r_inv
    uy = y * r_inv
    uz = z * r_inv

    def store(row, val):
        sh_ref[row:row + 1, :] = val.astype(sh_ref.dtype)

    store(0, jnp.full_like(ux, sh_scales[0]))               # l = 0
    if lmax >= 1:
        s1 = sh_scales[1]
        store(1, s1 * ux)                                    # l = 1
        store(2, s1 * uy)
        store(3, s1 * uz)
    if lmax >= 2:
        s2 = sh_scales[2]
        store(4, (s2 * _SQRT3) * ux * uz)                    # l = 2 (e3nn order)
        store(5, (s2 * _SQRT3) * ux * uy)
        store(6, s2 * (uy * uy - 0.5 * (ux * ux + uz * uz)))
        store(7, (s2 * _SQRT3) * uy * uz)
        store(8, (s2 * _SQRT3 * 0.5) * (uz * uz - ux * ux))

    n_sh = (lmax + 1) ** 2
    s_pad = sh_ref.shape[0]
    if zero_pad_rows and s_pad > n_sh:
        # Only needed when the caller consumes the padded transposed layout.
        sh_ref[n_sh:, :] = jnp.zeros((s_pad - n_sh, te), sh_ref.dtype)


def _choose_lane_tile(num_edges, lane_tile):
    """Tail-aware tile size: last tile mostly full; >=2 tiles when plentiful."""
    e = max(int(num_edges), 1)
    n_tiles = _cdiv(e, int(lane_tile))
    # Prefer >=2 grid steps so the "parallel" edge axis can shard across both
    # TensorCores on v7x; harmless (one extra tiny grid step) on 1-TC chips.
    if n_tiles == 1 and e >= 1024:
        n_tiles = 2
    return _round_up(_cdiv(e, n_tiles), 128)


def edge_sh_pallas(pos, edge_src, edge_dst, max_radius, *, number_of_basis,
                   sh_lmax, irrep_normalization='norm', lane_tile=8192,
                   out_dtype=jnp.float32, transpose_outputs=True,
                   approx_reciprocal=False):
    """Returns (edge_length_embedded (E,B), edge_sh (E,(lmax+1)^2)).

    With transpose_outputs=False the raw edges-on-lanes padded arrays
    ((B_pad, E_pad), (S_pad, E_pad)) are returned (padding zeroed) so a fused
    downstream tensor-product kernel can consume them without a relayout.
    """
    # TODO(synk): spherical harmonics implemented for lmax <= 2 (covers the
    # common EDF configs); extend with e3nn's l=3+ recursions if needed.
    assert sh_lmax in (0, 1, 2), "only sh_lmax <= 2 implemented"
    pos = jnp.asarray(pos, jnp.float32)
    edge_src = jnp.asarray(edge_src, jnp.int32)
    edge_dst = jnp.asarray(edge_dst, jnp.int32)
    num_edges = int(edge_src.shape[0])
    n_sh = (sh_lmax + 1) ** 2

    # Gather stays in XLA glue (tiny E x 3 op); all per-edge math is in Pallas.
    edge_vec = pos[edge_dst] - pos[edge_src]                 # (E, 3)

    # Edges on the lane axis -> lane-dense, 128-multiple kernel I/O.
    te = _choose_lane_tile(num_edges, lane_tile)
    e_pad = _round_up(max(num_edges, 1), te)
    vec_t = jnp.pad(edge_vec.T, ((0, 0), (0, e_pad - num_edges)))  # (3, E_pad)

    b_pad = _round_up(int(number_of_basis), 8)
    s_pad = _round_up(n_sh, 8)

    if irrep_normalization == 'norm':
        scales = tuple(1.0 for _ in range(sh_lmax + 1))
    elif irrep_normalization == 'component':
        scales = tuple(math.sqrt(2 * l + 1) for l in range(sh_lmax + 1))
    elif irrep_normalization == 'integral':
        scales = tuple(math.sqrt((2 * l + 1) / (4.0 * math.pi))
                       for l in range(sh_lmax + 1))
    else:
        raise ValueError(irrep_normalization)

    step = float(max_radius) / float(number_of_basis + 1)    # cutoff=True spacing
    kernel = functools.partial(
        _edge_sh_kernel,
        num_basis=int(number_of_basis), step=step,
        lmax=int(sh_lmax), sh_scales=scales,
        approx_reciprocal=bool(approx_reciprocal),
        zero_pad_rows=not transpose_outputs)

    emb_t, sh_t = pl.pallas_call(
        kernel,
        out_shape=(jax.ShapeDtypeStruct((b_pad, e_pad), out_dtype),
                   jax.ShapeDtypeStruct((s_pad, e_pad), out_dtype)),
        grid=(e_pad // te,),
        in_specs=[pl.BlockSpec((3, te), lambda i: (0, i))],
        out_specs=(pl.BlockSpec((b_pad, te), lambda i: (0, i)),
                   pl.BlockSpec((s_pad, te), lambda i: (0, i))),
        compiler_params=pltpu.CompilerParams(
            dimension_semantics=("parallel",)),
    )(vec_t)

    if not transpose_outputs:
        return emb_t, sh_t

    edge_length_embedded = emb_t[:number_of_basis, :num_edges].T
    edge_sh = sh_t[:n_sh, :num_edges].T
    return edge_length_embedded, edge_sh


class EdgeSHLayer:
    """JAX/Pallas port of the PyTorch EdgeSHLayer."""

    def __init__(self, sh_lmax, number_of_basis, irrep_normalization='norm'):
        self.sh_lmax = sh_lmax
        self.number_of_basis = number_of_basis
        self.irrep_normalization = irrep_normalization
        # o3.Irreps.spherical_harmonics(lmax, p=1) as a plain data structure.
        self.irreps_sh = tuple((1, (l, 1)) for l in range(sh_lmax + 1))

    def __call__(self, inputs):
        feature = inputs['feature']
        pos = inputs['pos']
        max_radius = inputs['max_neighbor_radius']
        edge_src, edge_dst = inputs['edge']
        assert feature.shape[-2] == pos.shape[-2]
        emb, sh = edge_sh_pallas(
            pos, edge_src, edge_dst, max_radius,
            number_of_basis=self.number_of_basis,
            sh_lmax=self.sh_lmax,
            irrep_normalization=self.irrep_normalization)
        return {
            'feature': feature,
            'pos': pos,
            'max_neighbor_radius': max_radius,
            'edge': (edge_src, edge_dst),
            'edge_length_embedded': emb,
            'edge_sh': sh,
            'irreps_sh': self.irreps_sh,
        }


def _reference_edge_sh(pos, edge_src, edge_dst, max_radius, number_of_basis,
                       sh_lmax, normalization='norm'):
    """Pure-JAX reference mirroring e3nn soft_one_hot_linspace + SH ('norm')."""
    pos = jnp.asarray(pos, jnp.float32)
    vec = pos[edge_dst] - pos[edge_src]
    length = jnp.linalg.norm(vec, axis=-1)

    values = jnp.linspace(0.0, max_radius, number_of_basis + 2)[1:-1]
    step = max_radius / (number_of_basis + 1)
    diff = (length[:, None] - values[None, :]) / step

    def sus(t):
        p = t > 0.0
        return jnp.where(p, jnp.exp(-1.0 / jnp.where(p, t, 1.0)), 0.0)

    emb = 1.14136 * math.exp(2.0) * sus(diff + 1.0) * sus(1.0 - diff)
    emb = emb * (number_of_basis ** 0.5)

    nrm = jnp.maximum(length[:, None], 1e-30)
    u = jnp.where(length[:, None] > 0, vec / nrm, jnp.zeros_like(vec))
    x, y, z = u[:, 0], u[:, 1], u[:, 2]
    cols = [jnp.ones_like(x)]
    if sh_lmax >= 1:
        cols += [x, y, z]
    if sh_lmax >= 2:
        cols += [_SQRT3 * x * z, _SQRT3 * x * y,
                 y * y - 0.5 * (x * x + z * z),
                 _SQRT3 * y * z, (_SQRT3 / 2.0) * (z * z - x * x)]
    sh = jnp.stack(cols, axis=-1)

    if normalization == 'norm':
        lscale = [1.0] * (sh_lmax + 1)
    elif normalization == 'component':
        lscale = [math.sqrt(2 * l + 1) for l in range(sh_lmax + 1)]
    else:
        lscale = [math.sqrt((2 * l + 1) / (4 * math.pi))
                  for l in range(sh_lmax + 1)]
    per_comp = []
    for l in range(sh_lmax + 1):
        per_comp += [lscale[l]] * (2 * l + 1)
    sh = sh * jnp.asarray(per_comp, jnp.float32)[None, :]
    return emb, sh


if __name__ == "__main__":
    key = jax.random.PRNGKey(0)
    k_pos, k_feat = jax.random.split(key)

    N, F_DIM = 16, 32
    SH_LMAX, NUM_BASIS = 2, 10
    MAX_RADIUS = 1.8

    pos = jax.random.normal(k_pos, (N, 3), dtype=jnp.float32)
    feature = jax.random.normal(k_feat, (N, F_DIM), dtype=jnp.float32)

    # Deterministic edge list (normally supplied by the upstream clustering
    # layer): complete directed graph without self-loops, E = N*(N-1) = 240.
    src_list, dst_list = [], []
    for i in range(N):
        for j in range(N):
            if i != j:
                src_list.append(i)
                dst_list.append(j)
    edge_src = jnp.asarray(src_list, dtype=jnp.int32)
    edge_dst = jnp.asarray(dst_list, dtype=jnp.int32)

    layer = EdgeSHLayer(sh_lmax=SH_LMAX, number_of_basis=NUM_BASIS,
                        irrep_normalization='norm')
    outputs = layer({'feature': feature, 'pos': pos,
                     'max_neighbor_radius': MAX_RADIUS,
                     'edge': (edge_src, edge_dst)})
    emb = outputs['edge_length_embedded']
    sh = outputs['edge_sh']
    jax.block_until_ready((emb, sh))

    ref_emb, ref_sh = _reference_edge_sh(pos, edge_src, edge_dst, MAX_RADIUS,
                                         NUM_BASIS, SH_LMAX, 'norm')
    assert emb.shape == (N * (N - 1), NUM_BASIS)
    assert sh.shape == (N * (N - 1), (SH_LMAX + 1) ** 2)
    assert bool(jnp.allclose(emb, ref_emb, atol=1e-5, rtol=1e-5))
    assert bool(jnp.allclose(sh, ref_sh, atol=1e-5, rtol=1e-5))

    print("KERNEL_OK")
</pallas_src>

<mosaic_0001>
module attributes {stable_mosaic.version = 11 : i64} {
  func.func @_edge_sh_kernel(%arg0: i32, %arg1: memref<3x256xf32, #tpu.memory_space<vmem>>, %arg2: memref<16x256xf32, #tpu.memory_space<vmem>>, %arg3: memref<16x256xf32, #tpu.memory_space<vmem>>) attributes {dimension_semantics = [#tpu.dimension_semantics<parallel>], iteration_bounds = array<i64: 1>, scalar_prefetch = 0 : i64, scratch_operands = 0 : i64, tpu.core_type = #tpu.core_type<tc>, window_params = [{transform_indices = @transform_0, window_bounds = array<i64: 3, 256>}, {transform_indices = @transform_1, window_bounds = array<i64: 16, 256>}, {transform_indices = @transform_2, window_bounds = array<i64: 16, 256>}]} {
    %c0 = arith.constant 0 : index
    %c0_0 = arith.constant 0 : index
    %0 = vector.load %arg1[%c0, %c0_0] : memref<3x256xf32, #tpu.memory_space<vmem>>, vector<3x256xf32>
    %1 = vector.extract_strided_slice %0 {offsets = [0, 0], sizes = [1, 256], strides = [1, 1]} : vector<3x256xf32> to vector<1x256xf32>
    %2 = vector.extract_strided_slice %0 {offsets = [1, 0], sizes = [1, 256], strides = [1, 1]} : vector<3x256xf32> to vector<1x256xf32>
    %3 = vector.extract_strided_slice %0 {offsets = [2, 0], sizes = [1, 256], strides = [1, 1]} : vector<3x256xf32> to vector<1x256xf32>
    %4 = arith.mulf %1, %1 : vector<1x256xf32>
    %5 = arith.mulf %2, %2 : vector<1x256xf32>
    %6 = arith.addf %4, %5 : vector<1x256xf32>
    %7 = arith.mulf %3, %3 : vector<1x256xf32>
    %8 = arith.addf %6, %7 : vector<1x256xf32>
    %cst = arith.constant 0.000000e+00 : f32
    %9 = vector.broadcast %cst : f32 to vector<1x256xf32>
    %10 = arith.cmpf ogt, %8, %9 : vector<1x256xf32>
    %cst_1 = arith.constant 1.000000e+00 : f32
    %11 = vector.broadcast %cst_1 : f32 to vector<1x256xf32>
    %12 = arith.select %10, %8, %11 : vector<1x256xi1>, vector<1x256xf32>
    %13 = math.rsqrt %12 : vector<1x256xf32>
    %cst_2 = arith.constant 0.000000e+00 : f32
    %14 = vector.broadcast %cst_2 : f32 to vector<1x256xf32>
    %15 = arith.select %10, %13, %14 : vector<1x256xi1>, vector<1x256xf32>
    %16 = arith.mulf %8, %15 : vector<1x256xf32>
    %17 = tpu.iota {dimensions = array<i32: 0>} : vector<16x256xi32>
    %18 = arith.sitofp %17 : vector<16x256xi32> to vector<16x256xf32>
    %cst_3 = arith.constant 1.000000e+00 : f32
    %19 = vector.broadcast %cst_3 : f32 to vector<16x256xf32>
    %20 = arith.addf %18, %19 : vector<16x256xf32>
    %cst_4 = arith.constant 0.163636357 : f32
    %21 = vector.broadcast %cst_4 : f32 to vector<16x256xf32>
    %22 = arith.mulf %20, %21 : vector<16x256xf32>
    %23 = vector.broadcast %16 : vector<1x256xf32> to vector<16x256xf32>
    %24 = arith.subf %23, %22 : vector<16x256xf32>
    %cst_5 = arith.constant 6.11111116 : f32
    %25 = vector.broadcast %cst_5 : f32 to vector<16x256xf32>
    %26 = arith.mulf %24, %25 : vector<16x256xf32>
    %27 = arith.mulf %26, %26 : vector<16x256xf32>
    %cst_6 = arith.constant 1.000000e+00 : f32
    %28 = vector.broadcast %cst_6 : f32 to vector<16x256xf32>
    %29 = arith.subf %28, %27 : vector<16x256xf32>
    %cst_7 = arith.constant 0.000000e+00 : f32
    %30 = vector.broadcast %cst_7 : f32 to vector<16x256xf32>
    %31 = arith.cmpf ogt, %29, %30 : vector<16x256xf32>
    %c10_i32 = arith.constant 10 : i32
    %32 = vector.broadcast %c10_i32 : i32 to vector<16x256xi32>
    %33 = arith.cmpi slt, %17, %32 : vector<16x256xi32>
    %34 = arith.andi %31, %33 : vector<16x256xi1>
    %cst_8 = arith.constant 1.000000e+00 : f32
    %35 = vector.broadcast %cst_8 : f32 to vector<16x256xf32>
    %36 = arith.select %34, %29, %35 : vector<16x256xi1>, vector<16x256xf32>
    %cst_9 = arith.constant 1.000000e+00 : f32
    %37 = vector.broadcast %cst_9 : f32 to vector<16x256xf32>
    %38 = arith.divf %37, %36 : vector<16x256xf32>
    %cst_10 = arith.constant -2.000000e+00 : f32
    %39 = vector.broadcast %cst_10 : f32 to vector<16x256xf32>
    %40 = arith.mulf %39, %38 : vector<16x256xf32>
    %41 = math.exp %40 : vector<16x256xf32>
    %cst_11 = arith.constant 2.666930e+01 : f32
    %42 = vector.broadcast %cst_11 : f32 to vector<16x256xf32>
    %43 = arith.mulf %42, %41 : vector<16x256xf32>
    %cst_12 = arith.constant 0.000000e+00 : f32
    %44 = vector.broadcast %cst_12 : f32 to vector<16x256xf32>
    %45 = arith.select %34, %43, %44 : vector<16x256xi1>, vector<16x256xf32>
    %c0_13 = arith.constant 0 : index
    %c0_14 = arith.constant 0 : index
    %46 = vector.load %arg2[%c0_13, %c0_14] : memref<16x256xf32, #tpu.memory_space<vmem>>, vector<16x256xf32>
    tpu.vector_store %arg2[%c0_13, %c0_14], %45 {strides = array<i32>} : memref<16x256xf32, #tpu.memory_space<vmem>>, vector<16x256xf32>,
    %47 = arith.mulf %1, %15 : vector<1x256xf32>
    %48 = arith.mulf %2, %15 : vector<1x256xf32>
    %49 = arith.mulf %3, %15 : vector<1x256xf32>
    %cst_15 = arith.constant 1.000000e+00 : f32
    %50 = vector.broadcast %cst_15 : f32 to vector<1x256xf32>
    %c0_16 = arith.constant 0 : index
    %c0_17 = arith.constant 0 : index
    %51 = vector.load %arg3[%c0_16, %c0_17] : memref<16x256xf32, #tpu.memory_space<vmem>>, vector<1x256xf32>
    tpu.vector_store %arg3[%c0_16, %c0_17], %50 {strides = array<i32>} : memref<16x256xf32, #tpu.memory_space<vmem>>, vector<1x256xf32>,
    %cst_18 = arith.constant 1.000000e+00 : f32
    %52 = vector.broadcast %cst_18 : f32 to vector<1x256xf32>
    %53 = arith.mulf %52, %47 : vector<1x256xf32>
    %c1 = arith.constant 1 : index
    %c0_19 = arith.constant 0 : index
    %54 = vector.load %arg3[%c1, %c0_19] : memref<16x256xf32, #tpu.memory_space<vmem>>, vector<1x256xf32>
    tpu.vector_store %arg3[%c1, %c0_19], %53 {strides = array<i32>} : memref<16x256xf32, #tpu.memory_space<vmem>>, vector<1x256xf32>,
    %cst_20 = arith.constant 1.000000e+00 : f32
    %55 = vector.broadcast %cst_20 : f32 to vector<1x256xf32>
    %56 = arith.mulf %55, %48 : vector<1x256xf32>
    %c2 = arith.constant 2 : index
    %c0_21 = arith.constant 0 : index
    %57 = vector.load %arg3[%c2, %c0_21] : memref<16x256xf32, #tpu.memory_space<vmem>>, vector<1x256xf32>
    tpu.vector_store %arg3[%c2, %c0_21], %56 {strides = array<i32>} : memref<16x256xf32, #tpu.memory_space<vmem>>, vector<1x256xf32>,
    %cst_22 = arith.constant 1.000000e+00 : f32
    %58 = vector.broadcast %cst_22 : f32 to vector<1x256xf32>
    %59 = arith.mulf %58, %49 : vector<1x256xf32>
    %c3 = arith.constant 3 : index
    %c0_23 = arith.constant 0 : index
    %60 = vector.load %arg3[%c3, %c0_23] : memref<16x256xf32, #tpu.memory_space<vmem>>, vector<1x256xf32>
    tpu.vector_store %arg3[%c3, %c0_23], %59 {strides = array<i32>} : memref<16x256xf32, #tpu.memory_space<vmem>>, vector<1x256xf32>,
    %cst_24 = arith.constant 1.73205078 : f32
    %61 = vector.broadcast %cst_24 : f32 to vector<1x256xf32>
    %62 = arith.mulf %61, %47 : vector<1x256xf32>
    %63 = arith.mulf %62, %49 : vector<1x256xf32>
    %c4 = arith.constant 4 : index
    %c0_25 = arith.constant 0 : index
    %64 = vector.load %arg3[%c4, %c0_25] : memref<16x256xf32, #tpu.memory_space<vmem>>, vector<1x256xf32>
    tpu.vector_store %arg3[%c4, %c0_25], %63 {strides = array<i32>} : memref<16x256xf32, #tpu.memory_space<vmem>>, vector<1x256xf32>,
    %cst_26 = arith.constant 1.73205078 : f32
    %65 = vector.broadcast %cst_26 : f32 to vector<1x256xf32>
    %66 = arith.mulf %65, %47 : vector<1x256xf32>
    %67 = arith.mulf %66, %48 : vector<1x256xf32>
    %c5 = arith.constant 5 : index
    %c0_27 = arith.constant 0 : index
    %68 = vector.load %arg3[%c5, %c0_27] : memref<16x256xf32, #tpu.memory_space<vmem>>, vector<1x256xf32>
    tpu.vector_store %arg3[%c5, %c0_27], %67 {strides = array<i32>} : memref<16x256xf32, #tpu.memory_space<vmem>>, vector<1x256xf32>,
    %69 = arith.mulf %48, %48 : vector<1x256xf32>
    %70 = arith.mulf %47, %47 : vector<1x256xf32>
    %71 = arith.mulf %49, %49 : vector<1x256xf32>
    %72 = arith.addf %70, %71 : vector<1x256xf32>
    %cst_28 = arith.constant 5.000000e-01 : f32
    %73 = vector.broadcast %cst_28 : f32 to vector<1x256xf32>
    %74 = arith.mulf %73, %72 : vector<1x256xf32>
    %75 = arith.subf %69, %74 : vector<1x256xf32>
    %cst_29 = arith.constant 1.000000e+00 : f32
    %76 = vector.broadcast %cst_29 : f32 to vector<1x256xf32>
    %77 = arith.mulf %76, %75 : vector<1x256xf32>
    %c6 = arith.constant 6 : index
    %c0_30 = arith.constant 0 : index
    %78 = vector.load %arg3[%c6, %c0_30] : memref<16x256xf32, #tpu.memory_space<vmem>>, vector<1x256xf32>
    tpu.vector_store %arg3[%c6, %c0_30], %77 {strides = array<i32>} : memref<16x256xf32, #tpu.memory_space<vmem>>, vector<1x256xf32>,
    %cst_31 = arith.constant 1.73205078 : f32
    %79 = vector.broadcast %cst_31 : f32 to vector<1x256xf32>
    %80 = arith.mulf %79, %48 : vector<1x256xf32>
    %81 = arith.mulf %80, %49 : vector<1x256xf32>
    %c7 = arith.constant 7 : index
    %c0_32 = arith.constant 0 : index
    %82 = vector.load %arg3[%c7, %c0_32] : memref<16x256xf32, #tpu.memory_space<vmem>>, vector<1x256xf32>
    tpu.vector_store %arg3[%c7, %c0_32], %81 {strides = array<i32>} : memref<16x256xf32, #tpu.memory_space<vmem>>, vector<1x256xf32>,
    %83 = arith.mulf %49, %49 : vector<1x256xf32>
    %84 = arith.mulf %47, %47 : vector<1x256xf32>
    %85 = arith.subf %83, %84 : vector<1x256xf32>
    %cst_33 = arith.constant 0.866025388 : f32
    %86 = vector.broadcast %cst_33 : f32 to vector<1x256xf32>
    %87 = arith.mulf %86, %85 : vector<1x256xf32>
    %c8 = arith.constant 8 : index
    %c0_34 = arith.constant 0 : index
    %88 = vector.load %arg3[%c8, %c0_34] : memref<16x256xf32, #tpu.memory_space<vmem>>, vector<1x256xf32>
    tpu.vector_store %arg3[%c8, %c0_34], %87 {strides = array<i32>} : memref<16x256xf32, #tpu.memory_space<vmem>>, vector<1x256xf32>,
    return
  }
  func.func @transform_0(%arg0: i32) -> (i32, i32) {
    %c0_i32 = arith.constant 0 : i32
    %c0_i32_0 = arith.constant 0 : i32
    return %c0_i32, %arg0 : i32, i32
  }
  func.func @transform_1(%arg0: i32) -> (i32, i32) {
    %c0_i32 = arith.constant 0 : i32
    %c0_i32_0 = arith.constant 0 : i32
    return %c0_i32, %arg0 : i32, i32
  }
  func.func @transform_2(%arg0: i32) -> (i32, i32) {
    %c0_i32 = arith.constant 0 : i32
    %c0_i32_0 = arith.constant 0 : i32
    return %c0_i32, %arg0 : i32, i32
  }
}

</mosaic_0001>

<llo_original>
// kernel: tpu_custom_call.1
$region0: #{tpu_custom_call.1}
  #allocation0 [shape = 'u32[]', space=smem, size = 0x4, offset = 0x4, fixed_abs, tag = 'smem constant byte address 0x4 - core index']
  #allocation1 [shape = 'u32[144,128]{1,0:T(1,128)}', space=vmem, size = 0x12000, scoped, tag = 'internal scratch']
  %s0 = inlined_call_operand.hbm [shape: f32[3,256], index: 0, kind: input, shape index: {}]
  %s1 = inlined_call_operand.hbm [shape: f32[16,256], index: 1, kind: output, shape index: {0}]
  %s2 = inlined_call_operand.hbm [shape: f32[16,256], index: 2, kind: output, shape index: {1}]
  %3 = xla_tuple %s1, %s2
  %s4 = sld [smem:[#allocation0]]
  $region26: #{tpu_custom_call.1} parent=0
    _
  %s6 = ssub.s32 1, %s4
  %s7 = scalar_select 0, %s6, %s4
  $region1: #{tpu_custom_call.1} parent=0
    #allocation2 [shape = 'u8[4096]{0}', space=vmem, size = 0x1000, scoped, tag = 'input window, operand 0, single buffered']
    #allocation3 [shape = 's32[1]{0}', space=sflag, size = 0x4, scoped, tag = 'scoped memory for tpu_custom_call.1']
    #allocation4 [shape = 's32[1]{0}', space=sflag, size = 0x4, scoped, tag = 'scoped memory for tpu_custom_call.1']
    #allocation5 [shape = 'u8[16384]{0}', space=vmem, size = 0x4000, scoped, tag = 'output window, operand 0, single buffered']
    #allocation6 [shape = 'u8[16384]{0}', space=vmem, size = 0x4000, scoped, tag = 'output window, operand 1, single buffered']
    #allocation7 [shape = 's32[1]{0}', space=sflag, size = 0x4, scoped, tag = 'scoped memory for tpu_custom_call.1']
    %8 = vsyncpa [#allocation3], 0
    %9 = vsyncpa [#allocation4], 0
    %10 = vsyncpa [#allocation7], 0
    // Predicated region
    $region2: #{tpu_custom_call.1} parent=1 // pred_check
      _
    $region3: #{tpu_custom_call.1} parent=1 // pred_check_branch
      %12 = sbr.rel (0) target = $region5
    $region4: #{tpu_custom_call.1} parent=1 // pred_region
      %s14 = ssub.s32 128, 128
      %15 = vsyncadd [#allocation3], %s14
      %s17 = sshll.u32 [#allocation2], 4
      %s18 = int_to_ptr.vmem [resolvable:$true] %s17
      %20 = dma.hbm_to_vmem [thread:$0]  %s0, 128, %s18, [#allocation3]
    $region5: #{tpu_custom_call.1} parent=1 // pred_fallthru
      _
    // Predicated region
    $region6: #{tpu_custom_call.1} parent=1 // pred_check
      _
    $region7: #{tpu_custom_call.1} parent=1 // pred_check_branch
      %22 = sbr.rel (0) target = $region9
    $region8: #{tpu_custom_call.1} parent=1 // pred_region
      %23 = dma.done [#allocation3], 128
    $region9: #{tpu_custom_call.1} parent=1 // pred_fallthru
      _
    %v24 = vld [vmem:[#allocation2] sm:$0x77]
    %v25 = vmul.f32 %v24, %v24
    %v27 = vrot.slane %v25, 5
    %v28 = vrot.slane %v27, 4
    %v30 = vadd.f32 %v25, %v28
    %v31 = vrot.slane %v25, 6
    %v32 = vrot.slane %v31, 4
    %v34 = vadd.f32 %v30, %v32
    %vm35 = vcmp.gt.f32.partialorder %v34, 0.0
    %v36 = vsel %vm35, %v34, 1.0
    %v37 = vrsqrt.pop %v36
    %v38 = vsel %vm35, %v37, 0.0
    %v39 = vmul.f32 %v34, %v38
    %v40 = vlaneseq
    %v41 = vshrl.u32 %v40, 7
    %v42 = vadd.s32 %v41, 8
    %v43 = vcvt.s32.f32 %v41
    %v44 = vcvt.s32.f32 %v42
    %v45 = vadd.f32 %v43, 1.0
    %v46 = vadd.f32 %v44, 1.0
    %v47 = vmul.f32 %v45, 0.16363636
    %v48 = vmul.f32 %v46, 0.16363636
    %v50 = vlaneseq
    %v51 = vshrl.u32 %v50, 7
    %v52 = vsub.s32 0, %v51
    %v53 = vrot.slane %v39, %v52
    %v54 = vlaneseq
    %v55 = vshrl.u32 %v54, 7
    %v56 = vsub.s32 4, %v55
    %v57 = vrot.slane %v39, %v56
    %v60 = vlaneseq
    %v61 = vshrl.u32 %v60, 7
    %v62 = vsub.s32 0, %v61
    %v63 = vrot.slane %v53, %v62
    %v64 = vlaneseq
    %v65 = vshrl.u32 %v64, 7
    %v66 = vsub.s32 0, %v65
    %v67 = vrot.slane %v57, %v66
    %v68 = vsub.f32 %v63, %v47
    %v69 = vsub.f32 %v67, %v47
    %v70 = vsub.f32 %v63, %v48
    %v71 = vsub.f32 %v67, %v48
    %v72 = vmul.f32 %v68, 6.111111
    %v73 = vmul.f32 %v69, 6.111111
    %v74 = vmul.f32 %v70, 6.111111
    %v75 = vmul.f32 %v71, 6.111111
    %v76 = vmul.f32 %v72, %v72
    %v77 = vmul.f32 %v73, %v73
    %v78 = vmul.f32 %v74, %v74
    %v79 = vmul.f32 %v75, %v75
    %v80 = vsub.f32 1.0, %v76
    %v81 = vsub.f32 1.0, %v77
    %v82 = vsub.f32 1.0, %v78
    %v83 = vsub.f32 1.0, %v79
    %vm84 = vcmp.gt.f32.partialorder %v80, 0.0
    %vm85 = vcmp.gt.f32.partialorder %v81, 0.0
    %vm86 = vcmp.gt.f32.partialorder %v82, 0.0
    %vm87 = vcmp.gt.f32.partialorder %v83, 0.0
    %vm88 = vcmp.lt.s32.totalorder %v41, 10
    %vm89 = vcmp.lt.s32.totalorder %v42, 10
    %vm90 = vmand %vm84, %vm88
    %vm91 = vmand %vm85, %vm88
    %vm92 = vmand %vm86, %vm89
    %vm93 = vmand %vm87, %vm89
    %v94 = vsel %vm90, %v80, 1.0
    %v95 = vsel %vm91, %v81, 1.0
    %v96 = vsel %vm92, %v82, 1.0
    %v97 = vsel %vm93, %v83, 1.0
    %v98 = vrcp.pop %v94
    %v99 = vmul.f32 1.0, %v98
    %v100 = vrcp.pop %v95
    %v101 = vmul.f32 1.0, %v100
    %v102 = vrcp.pop %v96
    %v103 = vmul.f32 1.0, %v102
    %v104 = vrcp.pop %v97
    %v105 = vmul.f32 1.0, %v104
    %v106 = vmul.f32 %v99, -2.0
    %v107 = vmul.f32 %v101, -2.0
    %v108 = vmul.f32 %v103, -2.0
    %v109 = vmul.f32 %v105, -2.0
    %v110 = vmul.f32 %v106, 1.442695
    %v111 = vpow.pop %v110
    %v112 = vmul.f32 %v107, 1.442695
    %v113 = vpow.pop %v112
    %v114 = vmul.f32 %v108, 1.442695
    %v115 = vpow.pop %v114
    %v116 = vmul.f32 %v109, 1.442695
    %v117 = vpow.pop %v116
    %v118 = vmul.f32 %v111, 26.6693
    %v119 = vmul.f32 %v113, 26.6693
    %v120 = vmul.f32 %v115, 26.6693
    %v121 = vmul.f32 %v117, 26.6693
    %v122 = vsel %vm90, %v118, 0.0
    %v123 = vsel %vm91, %v119, 0.0
    %v124 = vsel %vm92, %v120, 0.0
    %v125 = vsel %vm93, %v121, 0.0
    %126 = vst [vmem:[#allocation5] sm:$0xff] %v122
    %127 = vst [vmem:[#allocation5 + $0x8] sm:$0xff] %v123
    %128 = vst [vmem:[#allocation5 + $0x10] sm:$0xff] %v124
    %129 = vst [vmem:[#allocation5 + $0x18] sm:$0xff] %v125
    %v130 = vmul.f32 %v24, %v38
    %v132 = vrot.slane %v38, 7
    %v134 = vmul.f32 %v24, %v132
    %v135 = vrot.slane %v38, 6
    %v137 = vmul.f32 %v24, %v135
    %v138 = vlaneseq
    %vm139 = vcmp.ge.s32.totalorder %v138, 0
    %vm140 = vcmp.lt.s32.totalorder %v138, 256
    %vm141 = vmand %vm139, %vm140
    %142 = vst.msk [vmem:[#allocation6] ss:$8 sm:$0x3] %vm141, 1.0
    %143 = vst.msk [vmem:[#allocation6] ss:$8 sm:$0x0] %vm141, 1.0
    %v146 = vunpack.c.l.s4 1966171168
    %v147 = vunpack.c.0.s8 %v146
    %v148 = vlaneseq
    %v149 = vshrl.u32 %v148, 7
    %v150 = vsub.s32 %v147, %v149
    %v151 = vrot.slane %v130, %v150
    %v153 = vunpack.c.l.s4 1966171168
    %v154 = vunpack.c.0.s8 %v153
    %v155 = vlaneseq
    %v156 = vshrl.u32 %v155, 7
    %v157 = vsub.s32 %v154, %v156
    %v158 = vrot.slane %v151, %v157
    %s160 = scalar_lea.vmem [#allocation6], 1
    %161 = vst.msk [vmem:[%s160] ss:$8 sm:$0x3] %vm141, %v158
    %162 = vst.msk [vmem:[%s160] ss:$8 sm:$0x0] %vm141, %v158
    %v165 = vunpack.c.l.s4 1966171168
    %v166 = vunpack.c.0.s8 %v165
    %v167 = vlaneseq
    %v168 = vshrl.u32 %v167, 7
    %v169 = vsub.s32 %v166, %v168
    %v170 = vrot.slane %v134, %v169
    %v171 = vcombine.high %v170, %v170
    %v173 = vunpack.c.l.s4 1966171168
    %v174 = vunpack.c.0.s8 %v173
    %v175 = vlaneseq
    %v176 = vshrl.u32 %v175, 7
    %v177 = vsub.s32 %v174, %v176
    %v178 = vrot.slane %v171, %v177
    %s180 = scalar_lea.vmem [#allocation6], 2
    %181 = vst.msk [vmem:[%s180] ss:$8 sm:$0x3] %vm141, %v178
    %182 = vst.msk [vmem:[%s180] ss:$8 sm:$0x0] %vm141, %v178
    %v185 = vunpack.c.l.s4 1966171168
    %v186 = vunpack.c.0.s8 %v185
    %v187 = vlaneseq
    %v188 = vshrl.u32 %v187, 7
    %v189 = vsub.s32 %v186, %v188
    %v190 = vrot.slane %v137, %v189
    %v192 = vunpack.c.l.s4 1966171168
    %v193 = vunpack.c.0.s8 %v192
    %v194 = vlaneseq
    %v195 = vshrl.u32 %v194, 7
    %v196 = vsub.s32 %v193, %v195
    %v197 = vrot.slane %v190, %v196
    %v198 = vcombine.high %v197, %v197
    %s200 = scalar_lea.vmem [#allocation6], 3
    %201 = vst.msk [vmem:[%s200] ss:$8 sm:$0x3] %vm141, %v198
    %202 = vst.msk [vmem:[%s200] ss:$8 sm:$0x0] %vm141, %v198
    %v203 = vmul.f32 %v130, 1.7320508
    %v204 = vrot.slane %v137, 6
    %v205 = vrot.slane %v204, 4
    %v207 = vmul.f32 %v203, %v205
    %v210 = vunpack.c.l.s4 1966171168
    %v211 = vunpack.c.0.s8 %v210
    %v212 = vlaneseq
    %v213 = vshrl.u32 %v212, 7
    %v214 = vsub.s32 %v211, %v213
    %v215 = vrot.slane %v207, %v214
    %v217 = vunpack.c.l.s4 1966171168
    %v218 = vunpack.c.0.s8 %v217
    %v219 = vlaneseq
    %v220 = vshrl.u32 %v219, 7
    %v221 = vsub.s32 %v218, %v220
    %v222 = vrot.slane %v215, %v221
    %s224 = scalar_lea.vmem [#allocation6], 4
    %225 = vst.msk [vmem:[%s224] ss:$8 sm:$0x3] %vm141, %v222
    %226 = vst.msk [vmem:[%s224] ss:$8 sm:$0x0] %vm141, %v222
    %v227 = vrot.slane %v134, 5
    %v228 = vrot.slane %v227, 4
    %v230 = vmul.f32 %v203, %v228
    %v233 = vunpack.c.l.s4 1966171168
    %v234 = vunpack.c.0.s8 %v233
    %v235 = vlaneseq
    %v236 = vshrl.u32 %v235, 7
    %v237 = vsub.s32 %v234, %v236
    %v238 = vrot.slane %v230, %v237
    %v240 = vunpack.c.l.s4 1966171168
    %v241 = vunpack.c.0.s8 %v240
    %v242 = vlaneseq
    %v243 = vshrl.u32 %v242, 7
    %v244 = vsub.s32 %v241, %v243
    %v245 = vrot.slane %v238, %v244
    %s247 = scalar_lea.vmem [#allocation6], 5
    %248 = vst.msk [vmem:[%s247] ss:$8 sm:$0x3] %vm141, %v245
    %249 = vst.msk [vmem:[%s247] ss:$8 sm:$0x0] %vm141, %v245
    %v250 = vmul.f32 %v134, %v134
    %v251 = vmul.f32 %v130, %v130
    %v252 = vmul.f32 %v137, %v137
    %v254 = vrot.slane %v252, 6
    %v255 = vrot.slane %v254, 4
    %v257 = vadd.f32 %v251, %v255
    %v258 = vmul.f32 %v257, 0.5
    %v260 = vrot.slane %v258, 7
    %v262 = vsub.f32 %v250, %v260
    %v265 = vunpack.c.l.s4 1966171168
    %v266 = vunpack.c.0.s8 %v265
    %v267 = vlaneseq
    %v268 = vshrl.u32 %v267, 7
    %v269 = vsub.s32 %v266, %v268
    %v270 = vrot.slane %v262, %v269
    %v271 = vcombine.high %v270, %v270
    %v273 = vunpack.c.l.s4 1966171168
    %v274 = vunpack.c.0.s8 %v273
    %v275 = vlaneseq
    %v276 = vshrl.u32 %v275, 7
    %v277 = vsub.s32 %v274, %v276
    %v278 = vrot.slane %v271, %v277
    %s280 = scalar_lea.vmem [#allocation6], 6
    %281 = vst.msk [vmem:[%s280] ss:$8 sm:$0x3] %vm141, %v278
    %282 = vst.msk [vmem:[%s280] ss:$8 sm:$0x0] %vm141, %v278
    %v283 = vmul.f32 %v134, 1.7320508
    %v284 = vrot.slane %v137, 5
    %v285 = vrot.slane %v284, 4
    %v287 = vmul.f32 %v283, %v285
    %v290 = vunpack.c.l.s4 1966171168
    %v291 = vunpack.c.0.s8 %v290
    %v292 = vlaneseq
    %v293 = vshrl.u32 %v292, 7
    %v294 = vsub.s32 %v291, %v293
    %v295 = vrot.slane %v287, %v294
    %v296 = vcombine.high %v295, %v295
    %v298 = vunpack.c.l.s4 1966171168
    %v299 = vunpack.c.0.s8 %v298
    %v300 = vlaneseq
    %v301 = vshrl.u32 %v300, 7
    %v302 = vsub.s32 %v299, %v301
    %v303 = vrot.slane %v296, %v302
    %s305 = scalar_lea.vmem [#allocation6], 7
    %306 = vst.msk [vmem:[%s305] ss:$8 sm:$0x3] %vm141, %v303
    %307 = vst.msk [vmem:[%s305] ss:$8 sm:$0x0] %vm141, %v303
    %v309 = vrot.slane %v251, 6
    %v311 = vsub.f32 %v252, %v309
    %v312 = vmul.f32 %v311, 0.8660254
    %v315 = vunpack.c.l.s4 1966171168
    %v316 = vunpack.c.0.s8 %v315
    %v317 = vlaneseq
    %v318 = vshrl.u32 %v317, 7
    %v319 = vsub.s32 %v316, %v318
    %v320 = vrot.slane %v312, %v319
    %v322 = vunpack.c.l.s4 1966171168
    %v323 = vunpack.c.0.s8 %v322
    %v324 = vlaneseq
    %v325 = vshrl.u32 %v324, 7
    %v326 = vsub.s32 %v323, %v325
    %v327 = vrot.slane %v320, %v326
    %v328 = vcombine.high %v327, %v327
    %s330 = scalar_lea.vmem [#allocation6], 16
    %331 = vst.msk [vmem:[%s330] ss:$8 sm:$0x3] %vm141, %v328
    %332 = vst.msk [vmem:[%s330] ss:$8 sm:$0x0] %vm141, %v328
    // Predicated region
    $region10: #{tpu_custom_call.1} parent=1 // pred_check
      _
    $region11: #{tpu_custom_call.1} parent=1 // pred_check_branch
      %334 = sbr.rel (0) target = $region13
    $region12: #{tpu_custom_call.1} parent=1 // pred_region
      %s336 = ssub.s32 512, 512
      %337 = vsyncadd [#allocation4], %s336
      %s338 = sshll.u32 [#allocation5], 4
      %s339 = int_to_ptr.vmem [resolvable:$true] %s338
      %344 = dma.vmem_to_hbm [thread:$0]  %s339, 512, %s1, [#allocation4], 256, 256, 16
    $region13: #{tpu_custom_call.1} parent=1 // pred_fallthru
      _
    // Predicated region
    $region14: #{tpu_custom_call.1} parent=1 // pred_check
      _
    $region15: #{tpu_custom_call.1} parent=1 // pred_check_branch
      %346 = sbr.rel (0) target = $region17
    $region16: #{tpu_custom_call.1} parent=1 // pred_region
      %s348 = ssub.s32 512, 512
      %349 = vsyncadd [#allocation7], %s348
      %s350 = sshll.u32 [#allocation6], 4
      %s351 = int_to_ptr.vmem [resolvable:$true] %s350
      %356 = dma.vmem_to_hbm [thread:$0]  %s351, 512, %s2, [#allocation7], 256, 256, 16
    $region17: #{tpu_custom_call.1} parent=1 // pred_fallthru
      _
    // Predicated region
    $region18: #{tpu_custom_call.1} parent=1 // pred_check
      _
    $region19: #{tpu_custom_call.1} parent=1 // pred_check_branch
      %358 = sbr.rel (0) target = $region21
    $region20: #{tpu_custom_call.1} parent=1 // pred_region
      %359 = dma.done [#allocation4], 512
    $region21: #{tpu_custom_call.1} parent=1 // pred_fallthru
      _
    // Predicated region
    $region22: #{tpu_custom_call.1} parent=1 // pred_check
      _
    $region23: #{tpu_custom_call.1} parent=1 // pred_check_branch
      %361 = sbr.rel (0) target = $region25
    $region24: #{tpu_custom_call.1} parent=1 // pred_region
      %362 = dma.done [#allocation7], 512
    $region25: #{tpu_custom_call.1} parent=1 // pred_fallthru
      _
    %363 = vsyncpa [#allocation3], 1
    %364 = vsyncpa [#allocation4], 1
    %365 = vsyncpa [#allocation7], 1

</llo_original>
